<compile_context>
chip_gen: v6e
topology: v6e:2x2x1
jax: 0.10.0
libtpu: 0.0.40
codegen_flags: <defaults>
</compile_context>

<pallas_src>
import functools

import jax
import jax.numpy as jnp
from jax import lax
from jax.experimental import pallas as pl
from jax.experimental.pallas import tpu as pltpu


def _round_up(x, m):
    return (x + m - 1) // m * m


def _dstcn_kernel(x_main_ref, x_halo_ref, w_ref, wres_ref, b1_ref, br_ref,
                  alpha_ref, o_ref, win_ref, *, kernel_size, dilation, pad,
                  t_blk):
    """One (batch, time-tile) block, channels-first.

    x_main_ref : (1, C_in, T_BLK)          bf16  current time tile of padded x
    x_halo_ref : (1, C_in, HALO_LANE)      bf16  right-halo columns of same array
    w_ref      : (K, C_out, C_in)          bf16  conv1 weight, tap-major
    wres_ref   : (C_out, C_in)             bf16  1x1 residual conv weight
    b1_ref     : (C_out, 1)                f32   conv1 bias
    br_ref     : (C_out, 1)                f32   residual conv bias
    alpha_ref  : (C_out, 1)                f32   PReLU per-channel slope
    o_ref      : (1, C_out, T_BLK)         out   output tile, NCL layout
    win_ref    : (C_in, T_BLK + HALO_LANE) bf16  VMEM scratch (haloed window)
    """
    # Assemble the haloed window once (both writes are 128-lane aligned).
    win_ref[:, :t_blk] = x_main_ref[0]
    win_ref[:, t_blk:] = x_halo_ref[0]

    c_out = o_ref.shape[1]
    acc = jnp.zeros((c_out, t_blk), jnp.float32)

    # Main conv: K tap matmuls (C_out, C_in) x (C_in, T_BLK) on the MXU with
    # f32 accumulation.  The kernel is HBM-bound, so MXU / VPU have slack.
    for j in range(kernel_size):
        off = j * dilation
        acc += jnp.dot(w_ref[j], win_ref[:, off:off + t_blk],
                       preferred_element_type=jnp.float32)
    acc += b1_ref[...]                       # (C_out, 1) broadcasts over lanes

    # PReLU (per-channel slope).
    alpha = alpha_ref[...]
    acc = jnp.where(acc >= 0, acc, alpha * acc)

    # Residual 1x1 conv reuses the centre-tap columns of the same window and
    # is accumulated directly into `acc` (single live f32 temporary).
    acc += jnp.dot(wres_ref[...], win_ref[:, pad:pad + t_blk],
                   preferred_element_type=jnp.float32)
    acc += br_ref[...]

    o_ref[0] = acc.astype(o_ref.dtype)       # lane-dense (T_BLK) store


def ds_tcn_block(x, params, *, kernel_size, stride=1, dilation=1,
                 t_tile=1024, out_dtype=jnp.bfloat16,
                 vmem_budget_bytes=40 * 1024 * 1024):
    """dsTCNBlock forward.  x is NCL: (B, C_in, T).  Returns (B, C_out, T_out)."""
    assert stride == 1, "only stride == 1 supported in this kernel"
    halo = (kernel_size - 1) * dilation
    assert halo % 2 == 0, ("(kernel_size-1)*dilation must be even; otherwise the "
                           "PyTorch module itself shape-mismatches on the residual add")
    pad = halo // 2

    B, C_in, T = x.shape
    w1 = params['conv1_w']           # (C_out, C_in, K)  torch layout
    b1 = params['conv1_b']           # (C_out,)
    wr = params['res_w']             # (C_out, C_in, 1)
    br = params['res_b']             # (C_out,)
    alpha = params['prelu_alpha']    # (C_out,)
    K = kernel_size
    C_out = w1.shape[0]
    T_out = T + 2 * pad - halo       # == T for stride 1 / 'same' padding

    # ---------------- tiling (time = lane axis) ----------------------------
    LANE = 128
    halo_lane = _round_up(max(halo, 1), LANE)          # lane-rounded halo cols
    out_isz = jnp.dtype(out_dtype).itemsize

    def vmem_bytes(tb):
        # double-buffered inputs + output, resident weights, scratch, f32 acc
        x_b = 2 * C_in * tb * 2 + 2 * C_in * halo_lane * 2
        o_b = 2 * C_out * tb * out_isz
        w_b = 2 * (K + 1) * C_out * C_in * 2 + 3 * 2 * C_out * 4
        scr = C_in * (tb + halo_lane) * 2
        acc = C_out * tb * 4
        return x_b + o_b + w_b + scr + acc

    t_blk = max(halo_lane, _round_up(min(t_tile, T_out), halo_lane))
    while t_blk > halo_lane and vmem_bytes(t_blk) > vmem_budget_bytes:
        t_blk = max(halo_lane, (t_blk // 2) // halo_lane * halo_lane)

    num_t = -(-T_out // t_blk)
    t_total = num_t * t_blk
    t_padded = t_total + halo_lane                      # padded time length
    halo_blocks_per_tile = t_blk // halo_lane           # exact by construction

    # ---------------- wrapper glue (single fused cast+pad pass) ------------
    x_pad = jnp.pad(x.astype(jnp.bfloat16),
                    ((0, 0), (0, 0), (pad, t_padded - pad - T)))     # (B,C_in,t_padded)

    w_taps = jnp.transpose(w1, (2, 0, 1)).astype(jnp.bfloat16)       # (K, C_out, C_in)
    wres = wr[:, :, 0].astype(jnp.bfloat16)                          # (C_out, C_in)
    b1_c = b1.astype(jnp.float32).reshape(C_out, 1)
    br_c = br.astype(jnp.float32).reshape(C_out, 1)
    al_c = alpha.astype(jnp.float32).reshape(C_out, 1)

    in_specs = [
        # current time tile of the padded input
        pl.BlockSpec((1, C_in, t_blk), lambda b, t: (b, 0, t)),
        # right halo: next halo_lane columns of the SAME array (x_pad is passed
        # twice as aliased READ-ONLY inputs; small over-read, no extra copy)
        pl.BlockSpec((1, C_in, halo_lane),
                     lambda b, t: (b, 0, (t + 1) * halo_blocks_per_tile)),
        # weights / biases / alpha: constant block index -> resident in VMEM
        pl.BlockSpec((K, C_out, C_in), lambda b, t: (0, 0, 0)),
        pl.BlockSpec((C_out, C_in), lambda b, t: (0, 0)),
        pl.BlockSpec((C_out, 1), lambda b, t: (0, 0)),
        pl.BlockSpec((C_out, 1), lambda b, t: (0, 0)),
        pl.BlockSpec((C_out, 1), lambda b, t: (0, 0)),
    ]
    out_spec = pl.BlockSpec((1, C_out, t_blk), lambda b, t: (b, 0, t))

    flops = 2 * B * t_total * (K + 1) * C_in * C_out
    bytes_accessed = (B * C_in * t_padded * 2                    # bf16 x (read once)
                      + B * num_t * C_in * halo_lane * 2         # halo over-read
                      + (K + 1) * C_out * C_in * 2 + 3 * C_out * 4
                      + B * C_out * t_total * out_isz)           # output writes

    kernel = functools.partial(_dstcn_kernel, kernel_size=K, dilation=dilation,
                               pad=pad, t_blk=t_blk)

    out = pl.pallas_call(
        kernel,
        grid=(B, num_t),
        in_specs=in_specs,
        out_specs=out_spec,
        out_shape=jax.ShapeDtypeStruct((B, C_out, t_total), out_dtype),
        scratch_shapes=[pltpu.VMEM((C_in, t_blk + halo_lane), jnp.bfloat16)],
        compiler_params=pltpu.CompilerParams(
            dimension_semantics=("parallel", "parallel"),
            vmem_limit_bytes=48 * 1024 * 1024),
        cost_estimate=pl.CostEstimate(flops=int(flops), transcendentals=0,
                                      bytes_accessed=int(bytes_accessed)),
    )(x_pad, x_pad, w_taps, wres, b1_c, br_c, al_c)

    if t_total != T_out:
        # TODO(synk): an exactly T_out-wide output (relying on Pallas edge-block
        # masking) would remove this wrapper slice pass.
        out = out[:, :, :T_out]
    return out                                   # NCL: (B, C_out, T_out)


def _reference(x, params, *, kernel_size, stride=1, dilation=1):
    """Pure-JAX reference mirroring the PyTorch forward, on bf16-rounded inputs
    (matches the kernel's bf16-in / f32-accumulate numerics)."""
    pad = (kernel_size - 1) * dilation // 2
    xb = x.astype(jnp.bfloat16).astype(jnp.float32)
    w1 = params['conv1_w'].astype(jnp.bfloat16).astype(jnp.float32)
    wr = params['res_w'].astype(jnp.bfloat16).astype(jnp.float32)
    y = lax.conv_general_dilated(
        xb, w1, window_strides=(stride,), padding=[(pad, pad)],
        rhs_dilation=(dilation,), dimension_numbers=('NCH', 'OIH', 'NCH'),
        precision=lax.Precision.HIGHEST)
    y = y + params['conv1_b'][None, :, None]
    a = params['prelu_alpha'][None, :, None]
    y = jnp.where(y >= 0, y, a * y)
    r = lax.conv_general_dilated(
        xb, wr, window_strides=(stride,), padding=[(0, 0)],
        dimension_numbers=('NCH', 'OIH', 'NCH'),
        precision=lax.Precision.HIGHEST)
    r = r + params['res_b'][None, :, None]
    return y + r


def init_params(key, in_ch, out_ch, kernel_size):
    """Deterministic parameter init (PyTorch-style uniform bounds)."""
    k1, k2, k3, k4 = jax.random.split(key, 4)
    bound1 = 1.0 / (in_ch * kernel_size) ** 0.5
    bound2 = 1.0 / in_ch ** 0.5
    return {
        'conv1_w': jax.random.uniform(k1, (out_ch, in_ch, kernel_size),
                                      jnp.float32, -bound1, bound1),
        'conv1_b': jax.random.uniform(k2, (out_ch,), jnp.float32,
                                      -bound1, bound1),
        'res_w': jax.random.uniform(k3, (out_ch, in_ch, 1), jnp.float32,
                                    -bound2, bound2),
        'res_b': jax.random.uniform(k4, (out_ch,), jnp.float32,
                                    -bound2, bound2),
        'prelu_alpha': jnp.full((out_ch,), 0.25, jnp.float32),
    }


if __name__ == "__main__":
    B, C_in, C_out, T = 2, 4, 8, 16
    kernel_size, stride, dilation = 3, 1, 1

    key = jax.random.PRNGKey(0)
    kx, kp = jax.random.split(key)
    x = jax.random.normal(kx, (B, C_in, T), jnp.float32)   # NCL like PyTorch
    params = init_params(kp, C_in, C_out, kernel_size)

    out = ds_tcn_block(x, params, kernel_size=kernel_size,
                       stride=stride, dilation=dilation)
    out = jax.block_until_ready(out)

    ref = _reference(x, params, kernel_size=kernel_size,
                     stride=stride, dilation=dilation)
    assert out.shape == (B, C_out, T) and ref.shape == (B, C_out, T)
    # Output is bf16 (per perf review); compare with bf16-appropriate tolerance.
    assert jnp.allclose(out.astype(jnp.float32), ref, atol=2e-2, rtol=2e-2), \
        "mismatch vs reference"

    print("KERNEL_OK")
</pallas_src>

<mosaic_0001>
module attributes {stable_mosaic.version = 11 : i64} {
  func.func @_dstcn_kernel(%arg0: i32, %arg1: i32, %arg2: memref<1x4x128xbf16, #tpu.memory_space<vmem>>, %arg3: memref<1x4x128xbf16, #tpu.memory_space<vmem>>, %arg4: memref<3x8x4xbf16, #tpu.memory_space<vmem>>, %arg5: memref<8x4xbf16, #tpu.memory_space<vmem>>, %arg6: memref<8x1xf32, #tpu.memory_space<vmem>>, %arg7: memref<8x1xf32, #tpu.memory_space<vmem>>, %arg8: memref<8x1xf32, #tpu.memory_space<vmem>>, %arg9: memref<1x8x128xbf16, #tpu.memory_space<vmem>>, %arg10: memref<4x256xbf16, #tpu.memory_space<vmem>>) attributes {dimension_semantics = [#tpu.dimension_semantics<parallel>, #tpu.dimension_semantics<parallel>], iteration_bounds = array<i64: 2, 1>, scalar_prefetch = 0 : i64, scratch_operands = 1 : i64, tpu.core_type = #tpu.core_type<tc>, window_params = [{transform_indices = @transform_0, window_bounds = array<i64: 1, 4, 128>}, {transform_indices = @transform_1, window_bounds = array<i64: 1, 4, 128>}, {pipeline_mode = #tpu.pipeline_mode<synchronous>, transform_indices = @transform_2, window_bounds = array<i64: 3, 8, 4>}, {pipeline_mode = #tpu.pipeline_mode<synchronous>, transform_indices = @transform_3, window_bounds = array<i64: 8, 4>}, {pipeline_mode = #tpu.pipeline_mode<synchronous>, transform_indices = @transform_4, window_bounds = array<i64: 8, 1>}, {pipeline_mode = #tpu.pipeline_mode<synchronous>, transform_indices = @transform_5, window_bounds = array<i64: 8, 1>}, {pipeline_mode = #tpu.pipeline_mode<synchronous>, transform_indices = @transform_6, window_bounds = array<i64: 8, 1>}, {transform_indices = @transform_7, window_bounds = array<i64: 1, 8, 128>}]} {
    %c0 = arith.constant 0 : index
    %c0_0 = arith.constant 0 : index
    %c0_1 = arith.constant 0 : index
    %0 = vector.load %arg2[%c0, %c0_0, %c0_1] : memref<1x4x128xbf16, #tpu.memory_space<vmem>>, vector<1x4x128xbf16>
    %1 = vector.shape_cast %0 : vector<1x4x128xbf16> to vector<4x128xbf16>
    %c0_2 = arith.constant 0 : index
    %c0_3 = arith.constant 0 : index
    %2 = vector.load %arg10[%c0_2, %c0_3] : memref<4x256xbf16, #tpu.memory_space<vmem>>, vector<4x128xbf16>
    tpu.vector_store %arg10[%c0_2, %c0_3], %1 {strides = array<i32>} : memref<4x256xbf16, #tpu.memory_space<vmem>>, vector<4x128xbf16>,
    %c0_4 = arith.constant 0 : index
    %c0_5 = arith.constant 0 : index
    %c0_6 = arith.constant 0 : index
    %3 = vector.load %arg3[%c0_4, %c0_5, %c0_6] : memref<1x4x128xbf16, #tpu.memory_space<vmem>>, vector<1x4x128xbf16>
    %4 = vector.shape_cast %3 : vector<1x4x128xbf16> to vector<4x128xbf16>
    %c0_7 = arith.constant 0 : index
    %c128 = arith.constant 128 : index
    %5 = vector.load %arg10[%c0_7, %c128] : memref<4x256xbf16, #tpu.memory_space<vmem>>, vector<4x128xbf16>
    tpu.vector_store %arg10[%c0_7, %c128], %4 {strides = array<i32>} : memref<4x256xbf16, #tpu.memory_space<vmem>>, vector<4x128xbf16>,
    %cst = arith.constant 0.000000e+00 : f32
    %6 = vector.broadcast %cst : f32 to vector<8x128xf32>
    %c0_8 = arith.constant 0 : index
    %c0_9 = arith.constant 0 : index
    %c0_10 = arith.constant 0 : index
    %7 = vector.load %arg4[%c0_8, %c0_9, %c0_10] : memref<3x8x4xbf16, #tpu.memory_space<vmem>>, vector<1x8x4xbf16>
    %8 = vector.shape_cast %7 : vector<1x8x4xbf16> to vector<8x4xbf16>
    %c0_11 = arith.constant 0 : index
    %c0_12 = arith.constant 0 : index
    %9 = vector.load %arg10[%c0_11, %c0_12] : memref<4x256xbf16, #tpu.memory_space<vmem>>, vector<4x128xbf16>
    %cst_13 = arith.constant dense<0.000000e+00> : vector<8x128xf32>
    %10 = tpu.matmul %8, %9, %cst_13 {dimension_numbers = #tpu.dot_dimension_numbers<[1], [0], [0], [1], [0, 0, 1, 1], [], []>} : vector<8x4xbf16>, vector<4x128xbf16>, vector<8x128xf32> -> vector<8x128xf32>
    %11 = arith.addf %6, %10 : vector<8x128xf32>
    %c1 = arith.constant 1 : index
    %c0_14 = arith.constant 0 : index
    %c0_15 = arith.constant 0 : index
    %12 = vector.load %arg4[%c1, %c0_14, %c0_15] : memref<3x8x4xbf16, #tpu.memory_space<vmem>>, vector<1x8x4xbf16>
    %13 = vector.shape_cast %12 : vector<1x8x4xbf16> to vector<8x4xbf16>
    %c0_16 = arith.constant 0 : index
    %c1_17 = arith.constant 1 : index
    %14 = vector.load %arg10[%c0_16, %c1_17] : memref<4x256xbf16, #tpu.memory_space<vmem>>, vector<4x128xbf16>
    %cst_18 = arith.constant dense<0.000000e+00> : vector<8x128xf32>
    %15 = tpu.matmul %13, %14, %cst_18 {dimension_numbers = #tpu.dot_dimension_numbers<[1], [0], [0], [1], [0, 0, 1, 1], [], []>} : vector<8x4xbf16>, vector<4x128xbf16>, vector<8x128xf32> -> vector<8x128xf32>
    %16 = arith.addf %11, %15 : vector<8x128xf32>
    %c2 = arith.constant 2 : index
    %c0_19 = arith.constant 0 : index
    %c0_20 = arith.constant 0 : index
    %17 = vector.load %arg4[%c2, %c0_19, %c0_20] : memref<3x8x4xbf16, #tpu.memory_space<vmem>>, vector<1x8x4xbf16>
    %18 = vector.shape_cast %17 : vector<1x8x4xbf16> to vector<8x4xbf16>
    %c0_21 = arith.constant 0 : index
    %c2_22 = arith.constant 2 : index
    %19 = vector.load %arg10[%c0_21, %c2_22] : memref<4x256xbf16, #tpu.memory_space<vmem>>, vector<4x128xbf16>
    %cst_23 = arith.constant dense<0.000000e+00> : vector<8x128xf32>
    %20 = tpu.matmul %18, %19, %cst_23 {dimension_numbers = #tpu.dot_dimension_numbers<[1], [0], [0], [1], [0, 0, 1, 1], [], []>} : vector<8x4xbf16>, vector<4x128xbf16>, vector<8x128xf32> -> vector<8x128xf32>
    %21 = arith.addf %16, %20 : vector<8x128xf32>
    %c0_24 = arith.constant 0 : index
    %c0_25 = arith.constant 0 : index
    %22 = vector.load %arg6[%c0_24, %c0_25] : memref<8x1xf32, #tpu.memory_space<vmem>>, vector<8x1xf32>
    %23 = vector.broadcast %22 : vector<8x1xf32> to vector<8x128xf32>
    %24 = arith.addf %21, %23 : vector<8x128xf32>
    %c0_26 = arith.constant 0 : index
    %c0_27 = arith.constant 0 : index
    %25 = vector.load %arg8[%c0_26, %c0_27] : memref<8x1xf32, #tpu.memory_space<vmem>>, vector<8x1xf32>
    %cst_28 = arith.constant 0.000000e+00 : f32
    %26 = vector.broadcast %cst_28 : f32 to vector<8x128xf32>
    %27 = arith.cmpf oge, %24, %26 : vector<8x128xf32>
    %28 = vector.broadcast %25 : vector<8x1xf32> to vector<8x128xf32>
    %29 = arith.mulf %28, %24 : vector<8x128xf32>
    %30 = arith.select %27, %24, %29 : vector<8x128xi1>, vector<8x128xf32>
    %c0_29 = arith.constant 0 : index
    %c0_30 = arith.constant 0 : index
    %31 = vector.load %arg5[%c0_29, %c0_30] : memref<8x4xbf16, #tpu.memory_space<vmem>>, vector<8x4xbf16>
    %c0_31 = arith.constant 0 : index
    %c1_32 = arith.constant 1 : index
    %32 = vector.load %arg10[%c0_31, %c1_32] : memref<4x256xbf16, #tpu.memory_space<vmem>>, vector<4x128xbf16>
    %cst_33 = arith.constant dense<0.000000e+00> : vector<8x128xf32>
    %33 = tpu.matmul %31, %32, %cst_33 {dimension_numbers = #tpu.dot_dimension_numbers<[1], [0], [0], [1], [0, 0, 1, 1], [], []>} : vector<8x4xbf16>, vector<4x128xbf16>, vector<8x128xf32> -> vector<8x128xf32>
    %34 = arith.addf %30, %33 : vector<8x128xf32>
    %c0_34 = arith.constant 0 : index
    %c0_35 = arith.constant 0 : index
    %35 = vector.load %arg7[%c0_34, %c0_35] : memref<8x1xf32, #tpu.memory_space<vmem>>, vector<8x1xf32>
    %36 = vector.broadcast %35 : vector<8x1xf32> to vector<8x128xf32>
    %37 = arith.addf %34, %36 : vector<8x128xf32>
    %38 = arith.truncf %37 : vector<8x128xf32> to vector<8x128xbf16>
    %c0_36 = arith.constant 0 : index
    %c0_37 = arith.constant 0 : index
    %c0_38 = arith.constant 0 : index
    %39 = vector.load %arg9[%c0_36, %c0_37, %c0_38] : memref<1x8x128xbf16, #tpu.memory_space<vmem>>, vector<1x8x128xbf16>
    %40 = vector.shape_cast %39 : vector<1x8x128xbf16> to vector<8x128xbf16>
    %41 = vector.shape_cast %38 : vector<8x128xbf16> to vector<1x8x128xbf16>
    tpu.vector_store %arg9[%c0_36, %c0_37, %c0_38], %41 {strides = array<i32>} : memref<1x8x128xbf16, #tpu.memory_space<vmem>>, vector<1x8x128xbf16>,
    return
  }
  func.func @transform_0(%arg0: i32, %arg1: i32) -> (i32, i32, i32) {
    %c0_i32 = arith.constant 0 : i32
    %c0_i32_0 = arith.constant 0 : i32
    return %arg0, %c0_i32, %arg1 : i32, i32, i32
  }
  func.func @transform_1(%arg0: i32, %arg1: i32) -> (i32, i32, i32) {
    %c1_i32 = arith.constant 1 : i32
    %0 = arith.addi %arg1, %c1_i32 : i32
    %c1_i32_0 = arith.constant 1 : i32
    %1 = arith.muli %0, %c1_i32_0 : i32
    %c0_i32 = arith.constant 0 : i32
    %c0_i32_1 = arith.constant 0 : i32
    return %arg0, %c0_i32, %1 : i32, i32, i32
  }
  func.func @transform_2(%arg0: i32, %arg1: i32) -> (i32, i32, i32) {
    %c0_i32 = arith.constant 0 : i32
    %c0_i32_0 = arith.constant 0 : i32
    %c0_i32_1 = arith.constant 0 : i32
    %c0_i32_2 = arith.constant 0 : i32
    return %c0_i32, %c0_i32_0, %c0_i32_1 : i32, i32, i32
  }
  func.func @transform_3(%arg0: i32, %arg1: i32) -> (i32, i32) {
    %c0_i32 = arith.constant 0 : i32
    %c0_i32_0 = arith.constant 0 : i32
    %c0_i32_1 = arith.constant 0 : i32
    return %c0_i32, %c0_i32_0 : i32, i32
  }
  func.func @transform_4(%arg0: i32, %arg1: i32) -> (i32, i32) {
    %c0_i32 = arith.constant 0 : i32
    %c0_i32_0 = arith.constant 0 : i32
    %c0_i32_1 = arith.constant 0 : i32
    return %c0_i32, %c0_i32_0 : i32, i32
  }
  func.func @transform_5(%arg0: i32, %arg1: i32) -> (i32, i32) {
    %c0_i32 = arith.constant 0 : i32
    %c0_i32_0 = arith.constant 0 : i32
    %c0_i32_1 = arith.constant 0 : i32
    return %c0_i32, %c0_i32_0 : i32, i32
  }
  func.func @transform_6(%arg0: i32, %arg1: i32) -> (i32, i32) {
    %c0_i32 = arith.constant 0 : i32
    %c0_i32_0 = arith.constant 0 : i32
    %c0_i32_1 = arith.constant 0 : i32
    return %c0_i32, %c0_i32_0 : i32, i32
  }
  func.func @transform_7(%arg0: i32, %arg1: i32) -> (i32, i32, i32) {
    %c0_i32 = arith.constant 0 : i32
    %c0_i32_0 = arith.constant 0 : i32
    return %arg0, %c0_i32, %arg1 : i32, i32, i32
  }
}

</mosaic_0001>

<llo_original>
// kernel: tpu_custom_call.1
$region0: #{tpu_custom_call.1}
  #allocation0 [shape = 'u32[]', space=smem, size = 0x4, offset = 0x4, fixed_abs, tag = 'smem constant byte address 0x4 - core index']
  #allocation1 [shape = 'u32[144,128]{1,0:T(1,128)}', space=vmem, size = 0x12000, scoped, tag = 'internal scratch']
  #allocation2 [shape = 'bf16[4,256]{1,0:T(4,128)(2,1)}', space=vmem, size = 0x800, scoped, tag = 'scratch operand']
  %s0 = inlined_call_operand.vmem [shape: bf16[2,4,256], index: 0, kind: input, shape index: {}]
  %s1 = inlined_call_operand.vmem [shape: bf16[2,4,256], index: 1, kind: input, shape index: {}]
  %s2 = inlined_call_operand.vmem [shape: bf16[3,8,4], index: 2, kind: input, shape index: {}]
  %s3 = inlined_call_operand.vmem [shape: bf16[8,4], index: 3, kind: input, shape index: {}]
  %s4 = inlined_call_operand.vmem [shape: f32[8,1], index: 4, kind: input, shape index: {}]
  %s5 = inlined_call_operand.vmem [shape: f32[8,1], index: 5, kind: input, shape index: {}]
  %s6 = inlined_call_operand.vmem [shape: f32[8,1], index: 6, kind: input, shape index: {}]
  %s7 = inlined_call_operand.hbm [shape: bf16[2,8,128], index: 7, kind: output, shape index: {}]
  %s8 = sld [smem:[#allocation0]]
  $region61: #{tpu_custom_call.1} parent=0
    _
  %s10 = ssub.s32 1, %s8
  %s11 = scalar_select 0, %s10, %s8
  $region1: #{tpu_custom_call.1} parent=0
    #allocation3 [shape = 'u8[4096]{0}', space=vmem, size = 0x1000, scoped, tag = 'output window, operand 0']
    #allocation4 [shape = 's32[2]{0}', space=sflag, size = 0x8, scoped, tag = 'scoped memory for tpu_custom_call.1']
    %12 = vsyncpa [#allocation4], 0
    %s13 = scalar_lea.sflag [#allocation4], 1
    %14 = vsyncpa %s13, 0
    loop: start=0, step=1, limit=4
    $region2: #{tpu_custom_call.1} parent=1 // loop_pre_header
      _
    $region3: #{tpu_custom_call.1} parent=1 // loop_header
      %s16 = sphi 0, %s20
      %p17 = scmp.ge.s32.totalorder %s16, 4
      %s23 = sphi 0, %s35
      %s24 = sphi 0, %s31
      %s25 = sphi 0, %s23
      %s26 = sphi 0, %s24
      %s27 = sphi 0, %s25
      %s28 = sphi 0, %s26
      %s40 = sphi 0, %s42
      %s43 = sphi 0, %s40
      %s44 = sphi 0, %s43
      %s60 = sphi 0, %s44
      %s70 = sphi 0, %s72
      %s73 = sphi 0, %s70
      %s74 = sphi 0, %s73
      %s90 = sphi 0, %s74
      %s94 = sphi 0, %s94
      %s96 = sphi 0, %s94
      %s97 = sphi 0, %s96
      %s111 = sphi 0, %s97
      %s115 = sphi 0, %s115
      %s117 = sphi 0, %s115
      %s118 = sphi 0, %s117
      %s132 = sphi 0, %s118
      %s136 = sphi 0, %s136
      %s138 = sphi 0, %s136
      %s139 = sphi 0, %s138
      %s153 = sphi 0, %s139
      %s157 = sphi 0, %s157
      %s159 = sphi 0, %s157
      %s160 = sphi 0, %s159
      %s174 = sphi 0, %s160
      %s178 = sphi 0, %s178
      %s180 = sphi 0, %s178
      %s181 = sphi 0, %s180
      %s195 = sphi 0, %s181
      %s203 = sphi 0, %s205
      %s206 = sphi 0, %s203
      %s207 = sphi 0, %s206
      %s223 = sphi 0, %s207
    $region4: #{tpu_custom_call.1} parent=1 // loop_header_branch
      %19 = sbr.rel (%p17) target = $region8
    $region5: #{tpu_custom_call.1} parent=1 // loop_body
      %s21 = ssub.s32 %s16, 1
      %s22 = ssub.s32 %s16, 2
      %s29 = sadd.s32 1, %s24
      %p30 = scmp.ge.s32.totalorder %s29, 1
      %s31 = scalar_select %p30, 0, %s29
      %s32 = sadd.s32 1, %s23
      %s33 = scalar_select %p30, %s32, %s23
      %p34 = scmp.ge.s32.totalorder %s33, 2
      %s35 = scalar_select %p34, 0, %s33
      %s36 = ssub.s32 %s23, %s35
      %s37 = ssub.s32 %s24, %s31
      %s38 = sor.u32 %s36, %s37
      %p39 = scmp.eq.s32.totalorder %s38, 0
      %s41 = sadd.s32 %s40, 1
      %s42 = scalar_select %p39, %s40, %s41
      %p45 = pneg %p39
      %p46 = scmp.eq.s32.totalorder %s16, 1
      %p47 = por %p45, %p46
      %p48 = scmp.ne.s32.totalorder %s40, %s43
      %p49 = scmp.eq.s32.totalorder %s16, 0
      %p50 = por %p48, %p49
      %p51 = scmp.ne.s32.totalorder %s40, %s43
      %p52 = scmp.eq.s32.totalorder %s21, 1
      %p53 = por %p51, %p52
      %p54 = scmp.ne.s32.totalorder %s43, %s44
      %p55 = scmp.eq.s32.totalorder %s21, 0
      %p56 = por %p54, %p55
      %p57 = scmp.ne.s32.totalorder %s43, %s44
      %p58 = scmp.eq.s32.totalorder %s22, 1
      %p59 = por %p57, %p58
      %p61 = scmp.ne.s32.totalorder %s44, %s60
      %p62 = scmp.eq.s32.totalorder %s22, 0
      %p63 = por %p61, %p62
      %s64 = sadd.s32 %s24, 1
      %s65 = sadd.s32 %s31, 1
      %s66 = ssub.s32 %s23, %s35
      %s67 = ssub.s32 %s64, %s65
      %s68 = sor.u32 %s66, %s67
      %p69 = scmp.eq.s32.totalorder %s68, 0
      %s71 = sadd.s32 %s70, 1
      %s72 = scalar_select %p69, %s70, %s71
      %p75 = pneg %p69
      %p76 = scmp.eq.s32.totalorder %s16, 1
      %p77 = por %p75, %p76
      %p78 = scmp.ne.s32.totalorder %s70, %s73
      %p79 = scmp.eq.s32.totalorder %s16, 0
      %p80 = por %p78, %p79
      %p81 = scmp.ne.s32.totalorder %s70, %s73
      %p82 = scmp.eq.s32.totalorder %s21, 1
      %p83 = por %p81, %p82
      %p84 = scmp.ne.s32.totalorder %s73, %s74
      %p85 = scmp.eq.s32.totalorder %s21, 0
      %p86 = por %p84, %p85
      %p87 = scmp.ne.s32.totalorder %s73, %s74
      %p88 = scmp.eq.s32.totalorder %s22, 1
      %p89 = por %p87, %p88
      %p91 = scmp.ne.s32.totalorder %s74, %s90
      %p92 = scmp.eq.s32.totalorder %s22, 0
      %p93 = por %p91, %p92
      %s95 = sadd.s32 %s94, 1
      %p98 = scmp.eq.s32.totalorder %s16, 1
      %p99 = scmp.ne.s32.totalorder %s94, %s96
      %p100 = scmp.eq.s32.totalorder %s16, 0
      %p101 = por %p99, %p100
      %p102 = scmp.ne.s32.totalorder %s94, %s96
      %p103 = scmp.eq.s32.totalorder %s21, 1
      %p104 = por %p102, %p103
      %p105 = scmp.ne.s32.totalorder %s96, %s97
      %p106 = scmp.eq.s32.totalorder %s21, 0
      %p107 = por %p105, %p106
      %p108 = scmp.ne.s32.totalorder %s96, %s97
      %p109 = scmp.eq.s32.totalorder %s22, 1
      %p110 = por %p108, %p109
      %p112 = scmp.ne.s32.totalorder %s97, %s111
      %p113 = scmp.eq.s32.totalorder %s22, 0
      %p114 = por %p112, %p113
      %s116 = sadd.s32 %s115, 1
      %p119 = scmp.eq.s32.totalorder %s16, 1
      %p120 = scmp.ne.s32.totalorder %s115, %s117
      %p121 = scmp.eq.s32.totalorder %s16, 0
      %p122 = por %p120, %p121
      %p123 = scmp.ne.s32.totalorder %s115, %s117
      %p124 = scmp.eq.s32.totalorder %s21, 1
      %p125 = por %p123, %p124
      %p126 = scmp.ne.s32.totalorder %s117, %s118
      %p127 = scmp.eq.s32.totalorder %s21, 0
      %p128 = por %p126, %p127
      %p129 = scmp.ne.s32.totalorder %s117, %s118
      %p130 = scmp.eq.s32.totalorder %s22, 1
      %p131 = por %p129, %p130
      %p133 = scmp.ne.s32.totalorder %s118, %s132
      %p134 = scmp.eq.s32.totalorder %s22, 0
      %p135 = por %p133, %p134
      %s137 = sadd.s32 %s136, 1
      %p140 = scmp.eq.s32.totalorder %s16, 1
      %p141 = scmp.ne.s32.totalorder %s136, %s138
      %p142 = scmp.eq.s32.totalorder %s16, 0
      %p143 = por %p141, %p142
      %p144 = scmp.ne.s32.totalorder %s136, %s138
      %p145 = scmp.eq.s32.totalorder %s21, 1
      %p146 = por %p144, %p145
      %p147 = scmp.ne.s32.totalorder %s138, %s139
      %p148 = scmp.eq.s32.totalorder %s21, 0
      %p149 = por %p147, %p148
      %p150 = scmp.ne.s32.totalorder %s138, %s139
      %p151 = scmp.eq.s32.totalorder %s22, 1
      %p152 = por %p150, %p151
      %p154 = scmp.ne.s32.totalorder %s139, %s153
      %p155 = scmp.eq.s32.totalorder %s22, 0
      %p156 = por %p154, %p155
      %s158 = sadd.s32 %s157, 1
      %p161 = scmp.eq.s32.totalorder %s16, 1
      %p162 = scmp.ne.s32.totalorder %s157, %s159
      %p163 = scmp.eq.s32.totalorder %s16, 0
      %p164 = por %p162, %p163
      %p165 = scmp.ne.s32.totalorder %s157, %s159
      %p166 = scmp.eq.s32.totalorder %s21, 1
      %p167 = por %p165, %p166
      %p168 = scmp.ne.s32.totalorder %s159, %s160
      %p169 = scmp.eq.s32.totalorder %s21, 0
      %p170 = por %p168, %p169
      %p171 = scmp.ne.s32.totalorder %s159, %s160
      %p172 = scmp.eq.s32.totalorder %s22, 1
      %p173 = por %p171, %p172
      %p175 = scmp.ne.s32.totalorder %s160, %s174
      %p176 = scmp.eq.s32.totalorder %s22, 0
      %p177 = por %p175, %p176
      %s179 = sadd.s32 %s178, 1
      %p182 = scmp.eq.s32.totalorder %s16, 1
      %p183 = scmp.ne.s32.totalorder %s178, %s180
      %p184 = scmp.eq.s32.totalorder %s16, 0
      %p185 = por %p183, %p184
      %p186 = scmp.ne.s32.totalorder %s178, %s180
      %p187 = scmp.eq.s32.totalorder %s21, 1
      %p188 = por %p186, %p187
      %p189 = scmp.ne.s32.totalorder %s180, %s181
      %p190 = scmp.eq.s32.totalorder %s21, 0
      %p191 = por %p189, %p190
      %p192 = scmp.ne.s32.totalorder %s180, %s181
      %p193 = scmp.eq.s32.totalorder %s22, 1
      %p194 = por %p192, %p193
      %p196 = scmp.ne.s32.totalorder %s181, %s195
      %p197 = scmp.eq.s32.totalorder %s22, 0
      %p198 = por %p196, %p197
      %s199 = ssub.s32 %s23, %s35
      %s200 = ssub.s32 %s24, %s31
      %s201 = sor.u32 %s199, %s200
      %p202 = scmp.eq.s32.totalorder %s201, 0
      %s204 = sadd.s32 %s203, 1
      %s205 = scalar_select %p202, %s203, %s204
      %p208 = pneg %p202
      %p209 = scmp.eq.s32.totalorder %s16, 1
      %p210 = por %p208, %p209
      %p211 = scmp.ne.s32.totalorder %s203, %s206
      %p212 = scmp.eq.s32.totalorder %s16, 0
      %p213 = por %p211, %p212
      %p214 = scmp.ne.s32.totalorder %s203, %s206
      %p215 = scmp.eq.s32.totalorder %s21, 1
      %p216 = por %p214, %p215
      %p217 = scmp.ne.s32.totalorder %s206, %s207
      %p218 = scmp.eq.s32.totalorder %s21, 0
      %p219 = por %p217, %p218
      %p220 = scmp.ne.s32.totalorder %s206, %s207
      %p221 = scmp.eq.s32.totalorder %s22, 1
      %p222 = por %p220, %p221
      %p224 = scmp.ne.s32.totalorder %s207, %s223
      %p225 = scmp.eq.s32.totalorder %s22, 0
      %p226 = por %p224, %p225
      %p227 = scmp.le.s32.totalorder 1, %s16
      %p228 = scmp.lt.s32.totalorder %s16, 3
      %p229 = pnand %p227, %p228
      %p230 = pneg %p229
      // Predicated region
      $region9: #{tpu_custom_call.1} parent=5 // pred_check
        _
      $region10: #{tpu_custom_call.1} parent=5 // pred_check_branch
        %232 = sbr.rel (%p229) target = $region12
      $region11: #{tpu_custom_call.1} parent=5 // pred_region
        %s233 = ssub.s32 %s16, 1
        // Predicated region
        $region13: #{tpu_custom_call.1} parent=11 // pred_check
          %p234 = pneg %p107
        $region14: #{tpu_custom_call.1} parent=11 // pred_check_branch
          %236 = sbr.rel (%p234) target = $region16
        $region15: #{tpu_custom_call.1} parent=11 // pred_region
          _
        $region16: #{tpu_custom_call.1} parent=11 // pred_fallthru
          _
        // Predicated region
        $region17: #{tpu_custom_call.1} parent=11 // pred_check
          %p237 = pneg %p128
        $region18: #{tpu_custom_call.1} parent=11 // pred_check_branch
          %239 = sbr.rel (%p237) target = $region20
        $region19: #{tpu_custom_call.1} parent=11 // pred_region
          _
        $region20: #{tpu_custom_call.1} parent=11 // pred_fallthru
          _
        // Predicated region
        $region21: #{tpu_custom_call.1} parent=11 // pred_check
          %p240 = pneg %p149
        $region22: #{tpu_custom_call.1} parent=11 // pred_check_branch
          %242 = sbr.rel (%p240) target = $region24
        $region23: #{tpu_custom_call.1} parent=11 // pred_region
          _
        $region24: #{tpu_custom_call.1} parent=11 // pred_fallthru
          _
        // Predicated region
        $region25: #{tpu_custom_call.1} parent=11 // pred_check
          %p243 = pneg %p170
        $region26: #{tpu_custom_call.1} parent=11 // pred_check_branch
          %245 = sbr.rel (%p243) target = $region28
        $region27: #{tpu_custom_call.1} parent=11 // pred_region
          _
        $region28: #{tpu_custom_call.1} parent=11 // pred_fallthru
          _
        // Predicated region
        $region29: #{tpu_custom_call.1} parent=11 // pred_check
          %p246 = pneg %p191
        $region30: #{tpu_custom_call.1} parent=11 // pred_check_branch
          %248 = sbr.rel (%p246) target = $region32
        $region31: #{tpu_custom_call.1} parent=11 // pred_region
          _
        $region32: #{tpu_custom_call.1} parent=11 // pred_fallthru
          _
      $region12: #{tpu_custom_call.1} parent=5 // pred_fallthru
        _
      %p249 = scmp.lt.s32.totalorder %s16, 2
      // Predicated region
      $region33: #{tpu_custom_call.1} parent=5 // pred_check
        %p250 = pneg %p249
      $region34: #{tpu_custom_call.1} parent=5 // pred_check_branch
        %252 = sbr.rel (%p250) target = $region36
      $region35: #{tpu_custom_call.1} parent=5 // pred_region
        // Predicated region
        $region37: #{tpu_custom_call.1} parent=35 // pred_check
          %p253 = pneg %p50
        $region38: #{tpu_custom_call.1} parent=35 // pred_check_branch
          %255 = sbr.rel (%p253) target = $region40
        $region39: #{tpu_custom_call.1} parent=35 // pred_region
          %p256 = scmp.lt.s32.totalorder %s23, 1
          %s257 = scalar_select %p256, %s23, 1
          %p258 = scmp.lt.s32.totalorder %s24, 1
          %s259 = scalar_select %p258, %s24, 1
          %s260 = smul.addr %s257, 2
          %s261 = sadd.s32 %s259, %s260
          %s262 = smul.addr %s261, 2
          %s263 = scalar_lea.vmem %s0, %s262
        $region40: #{tpu_custom_call.1} parent=35 // pred_fallthru
          _
        // Predicated region
        $region41: #{tpu_custom_call.1} parent=35 // pred_check
          %p264 = pneg %p80
        $region42: #{tpu_custom_call.1} parent=35 // pred_check_branch
          %266 = sbr.rel (%p264) target = $region44
        $region43: #{tpu_custom_call.1} parent=35 // pred_region
          %s267 = sadd.s32 %s24, 1
          %p268 = scmp.lt.s32.totalorder %s23, 1
          %s269 = scalar_select %p268, %s23, 1
          %p270 = scmp.lt.s32.totalorder %s267, 1
          %s271 = scalar_select %p270, %s267, 1
          %s272 = smul.addr %s269, 2
          %s273 = sadd.s32 %s271, %s272
          %s274 = smul.addr %s273, 2
          %s275 = scalar_lea.vmem %s1, %s274
          %s276 = sadd.s32 %s24, 1
        $region44: #{tpu_custom_call.1} parent=35 // pred_fallthru
          _
      $region36: #{tpu_custom_call.1} parent=5 // pred_fallthru
        _
      %p277 = scmp.le.s32.totalorder 1, %s16
      %p278 = scmp.lt.s32.totalorder %s16, 3
      %p279 = pnand %p277, %p278
      %p280 = pneg %p279
      // Predicated region
      $region45: #{tpu_custom_call.1} parent=5 // pred_check
        _
      $region46: #{tpu_custom_call.1} parent=5 // pred_check_branch
        %282 = sbr.rel (%p279) target = $region48
      $region47: #{tpu_custom_call.1} parent=5 // pred_region
        %s283 = ssub.s32 %s16, 1
        %p284 = scmp.lt.s32.totalorder %s25, 1
        %s285 = scalar_select %p284, %s25, 1
        %p286 = scmp.lt.s32.totalorder %s26, 1
        %s287 = scalar_select %p286, %s26, 1
        %s288 = smul.addr %s285, 2
        %s289 = sadd.s32 %s287, %s288
        %s290 = smul.addr %s289, 2
        %s291 = scalar_lea.vmem %s0, %s290
        %p292 = pneg %p56
        %p293 = pneg %p53
        %s294 = sadd.s32 %s26, 1
        %p295 = scmp.lt.s32.totalorder %s25, 1
        %s296 = scalar_select %p295, %s25, 1
        %p297 = scmp.lt.s32.totalorder %s294, 1
        %s298 = scalar_select %p297, %s294, 1
        %s299 = smul.addr %s296, 2
        %s300 = sadd.s32 %s298, %s299
        %s301 = smul.addr %s300, 2
        %s302 = scalar_lea.vmem %s1, %s301
        %p303 = pneg %p86
        %p304 = pneg %p83
        %p305 = pneg %p107
        %p306 = pneg %p104
        %p307 = pneg %p128
        %p308 = pneg %p125
        %p309 = pneg %p149
        %p310 = pneg %p146
        %p311 = pneg %p170
        %p312 = pneg %p167
        %p313 = pneg %p191
        %p314 = pneg %p188
        %p315 = pneg %p219
        %p316 = pneg %p216
        %s317 = sand.u32 %s206, 1
        %s318 = scalar_lea.sflag [#allocation4], %s317
        %s319 = sand.u32 %s206, 1
        %s320 = smul.addr %s319, 4
        %s321 = scalar_lea.vmem [#allocation3], %s320
        %p322 = scmp.lt.s32.totalorder %s25, 1
        %s323 = scalar_select %p322, %s25, 1
        %p324 = scmp.lt.s32.totalorder %s26, 1
        %s325 = scalar_select %p324, %s26, 1
        %s326 = smul.addr %s323, 2
        %s327 = sadd.s32 %s325, %s326
        %s328 = smul.addr %s327, 2
        %s329 = scalar_lea.vmem %s0, %s328
        %s330 = sadd.s32 %s26, 1
        %p331 = scmp.lt.s32.totalorder %s25, 1
        %s332 = scalar_select %p331, %s25, 1
        %p333 = scmp.lt.s32.totalorder %s330, 1
        %s334 = scalar_select %p333, %s330, 1
        %s335 = smul.addr %s332, 2
        %s336 = sadd.s32 %s334, %s335
        %s337 = smul.addr %s336, 2
        %s338 = scalar_lea.vmem %s1, %s337
        %s339 = sadd.s32 %s26, 1
        %v341 = vld [vmem:[%s329] sm:$0x3]
        %342 = vst [vmem:[#allocation2] sm:$0x3] %v341
        %v343 = vld [vmem:[%s338] sm:$0x3]
        %344 = vst [vmem:[#allocation2 + $0x2] sm:$0x3] %v343
        %v345 = vld [vmem:[%s2] sm:$0xf]
        %v346 = vld [vmem:[#allocation2] sm:$0x3]
        %s347 = scalar_lea.vmem %s2, 4
        %v348 = vld [vmem:[%s347] sm:$0xf]
        %v349 = vld [vmem:[#allocation2] sm:$0xf]
        %v352 = vunpack.c.l.s4 1983009808
        %v353 = vunpack.c.0.s8 %v352
        %v354 = vlaneseq
        %v355 = vshrl.u32 %v354, 7
        %v356 = vsub.s32 %v353, %v355
        %v357 = vrot.slane %v349, %v356
        %v358 = vcombine.high %v357, %v357
        %359 = vrot.lane.b32.xlu0 %v357, 127
        %v360 = vpop.permute.xlu0 %359
        %361 = vrot.lane.b32.xlu0 %v358, 127
        %v362 = vpop.permute.xlu0 %361
        %vm363 = vcmask 1039360
        %v364 = vsel %vm363, %v360, %v362
        %vm365 = vcmask 31744
        %v367 = vsel %vm365, %v348, 0
        %vm369 = vcmask 1041408
        %v371 = vsel %vm369, %v364, 0
        %373 = vmatprep.subr.bf16.mxu0 0
        %374 = vmatpush1.bf16.msra.mxu0 0
        %375 = vmatprep.subr.bf16.mxu0 0
        %376 = vmatpush1.bf16.msra.mxu0 0
        %377 = vmatprep.subr.bf16.mxu0 0
        %378 = vmatpush1.bf16.msra.mxu0 0
        %379 = vmatprep.subr.bf16.mxu0 0
        %380 = vmatpush1.bf16.msra.mxu0 0
        %381 = vmatprep.subr.bf16.mxu0 0
        %382 = vmatpush1.bf16.msra.mxu0 0
        %383 = vmatprep.subr.bf16.mxu0 0
        %384 = vmatpush1.bf16.msra.mxu0 0
        %385 = vmatprep.subr.bf16.mxu0 0
        %386 = vmatpush1.bf16.msra.mxu0 0
        %387 = vmatprep.subr.bf16.mxu0 0
        %388 = vmatpush1.bf16.msra.mxu0 %v371
        %389 = vmatprep.subr.bf16.mxu0 0
        %390 = vmatpush2.bf16.msra.mxu0 0
        %391 = vmatprep.subr.bf16.mxu0 0
        %392 = vmatpush2.bf16.msra.mxu0 0
        %393 = vmatprep.subr.bf16.mxu0 0
        %394 = vmatpush2.bf16.msra.mxu0 0
        %395 = vmatprep.subr.bf16.mxu0 0
        %396 = vmatpush2.bf16.msra.mxu0 0
        %397 = vmatprep.subr.bf16.mxu0 0
        %398 = vmatpush2.bf16.msra.mxu0 0
        %399 = vmatprep.subr.bf16.mxu0 0
        %400 = vmatpush2.bf16.msra.mxu0 0
        %401 = vmatprep.subr.bf16.mxu0 0
        %402 = vmatpush2.bf16.msra.mxu0 0
        %403 = vmatprep.subr.bf16.mxu0 0
        %404 = vmatpush2.bf16.msra.mxu0 0
        %405 = vmatprep.mubr.bf16.mxu0 0
        %406 = vmatmul.mubr.bf16.gmra.mxu0 %v367
        %v407 = vpop.f32.mrf.mxu0
        %v408 = vadd.f32 0.0, %v407
        %v409 = vpop.f32.mrf.mxu0
        %v410 = vpop.f32.mrf.mxu0
        %v411 = vpop.f32.mrf.mxu0
        %412 = vdwg.mxu0
        %v414 = vsel %vm365, %v345, 0
        %v417 = vsel %vm369, %v346, 0
        %419 = vmatprep.subr.bf16.mxu0 0
        %420 = vmatpush1.bf16.msra.mxu0 0
        %421 = vmatprep.subr.bf16.mxu0 0
        %422 = vmatpush1.bf16.msra.mxu0 0
        %423 = vmatprep.subr.bf16.mxu0 0
        %424 = vmatpush1.bf16.msra.mxu0 0
        %425 = vmatprep.subr.bf16.mxu0 0
        %426 = vmatpush1.bf16.msra.mxu0 0
        %427 = vmatprep.subr.bf16.mxu0 0
        %428 = vmatpush1.bf16.msra.mxu0 0
        %429 = vmatprep.subr.bf16.mxu0 0
        %430 = vmatpush1.bf16.msra.mxu0 0
        %431 = vmatprep.subr.bf16.mxu0 0
        %432 = vmatpush1.bf16.msra.mxu0 0
        %433 = vmatprep.subr.bf16.mxu0 0
        %434 = vmatpush1.bf16.msra.mxu0 %v417
        %435 = vmatprep.subr.bf16.mxu0 0
        %436 = vmatpush2.bf16.msra.mxu0 0
        %437 = vmatprep.subr.bf16.mxu0 0
        %438 = vmatpush2.bf16.msra.mxu0 0
        %439 = vmatprep.subr.bf16.mxu0 0
        %440 = vmatpush2.bf16.msra.mxu0 0
        %441 = vmatprep.subr.bf16.mxu0 0
        %442 = vmatpush2.bf16.msra.mxu0 0
        %443 = vmatprep.subr.bf16.mxu0 0
        %444 = vmatpush2.bf16.msra.mxu0 0
        %445 = vmatprep.subr.bf16.mxu0 0
        %446 = vmatpush2.bf16.msra.mxu0 0
        %447 = vmatprep.subr.bf16.mxu0 0
        %448 = vmatpush2.bf16.msra.mxu0 0
        %449 = vmatprep.subr.bf16.mxu0 0
        %450 = vmatpush2.bf16.msra.mxu0 0
        %451 = vmatprep.mubr.bf16.mxu0 0
        %452 = vmatmul.mubr.bf16.gmra.mxu0 %v414
        %v453 = vpop.f32.mrf.mxu0
        %v454 = vadd.f32 %v408, %v453
        %v455 = vpop.f32.mrf.mxu0
        %v456 = vpop.f32.mrf.mxu0
        %v457 = vpop.f32.mrf.mxu0
        %458 = vdwg.mxu0
        %s459 = scalar_lea.vmem %s2, 8
        %v460 = vld [vmem:[%s459] sm:$0xf]
        %v461 = vld [vmem:[#allocation2] sm:$0xf]
        %v464 = vunpack.c.l.s4 1983009808
        %v465 = vunpack.c.0.s8 %v464
        %v466 = vlaneseq
        %v467 = vshrl.u32 %v466, 7
        %v468 = vsub.s32 %v465, %v467
        %v469 = vrot.slane %v461, %v468
        %v470 = vcombine.high %v469, %v469
        %471 = vrot.lane.b32.xlu0 %v469, 126
        %v472 = vpop.permute.xlu0 %471
        %473 = vrot.lane.b32.xlu0 %v470, 126
        %v474 = vpop.permute.xlu0 %473
        %vm475 = vcmask 1031168
        %v476 = vsel %vm475, %v472, %v474
        %v478 = vsel %vm365, %v460, 0
        %v481 = vsel %vm369, %v476, 0
        %483 = vmatprep.subr.bf16.mxu0 0
        %484 = vmatpush1.bf16.msra.mxu0 0
        %485 = vmatprep.subr.bf16.mxu0 0
        %486 = vmatpush1.bf16.msra.mxu0 0
        %487 = vmatprep.subr.bf16.mxu0 0
        %488 = vmatpush1.bf16.msra.mxu0 0
        %489 = vmatprep.subr.bf16.mxu0 0
        %490 = vmatpush1.bf16.msra.mxu0 0
        %491 = vmatprep.subr.bf16.mxu0 0
        %492 = vmatpush1.bf16.msra.mxu0 0
        %493 = vmatprep.subr.bf16.mxu0 0
        %494 = vmatpush1.bf16.msra.mxu0 0
        %495 = vmatprep.subr.bf16.mxu0 0
        %496 = vmatpush1.bf16.msra.mxu0 0
        %497 = vmatprep.subr.bf16.mxu0 0
        %498 = vmatpush1.bf16.msra.mxu0 %v481
        %499 = vmatprep.subr.bf16.mxu0 0
        %500 = vmatpush2.bf16.msra.mxu0 0
        %501 = vmatprep.subr.bf16.mxu0 0
        %502 = vmatpush2.bf16.msra.mxu0 0
        %503 = vmatprep.subr.bf16.mxu0 0
        %504 = vmatpush2.bf16.msra.mxu0 0
        %505 = vmatprep.subr.bf16.mxu0 0
        %506 = vmatpush2.bf16.msra.mxu0 0
        %507 = vmatprep.subr.bf16.mxu0 0
        %508 = vmatpush2.bf16.msra.mxu0 0
        %509 = vmatprep.subr.bf16.mxu0 0
        %510 = vmatpush2.bf16.msra.mxu0 0
        %511 = vmatprep.subr.bf16.mxu0 0
        %512 = vmatpush2.bf16.msra.mxu0 0
        %513 = vmatprep.subr.bf16.mxu0 0
        %514 = vmatpush2.bf16.msra.mxu0 0
        %515 = vmatprep.mubr.bf16.mxu0 0
        %516 = vmatmul.mubr.bf16.gmra.mxu0 %v478
        %v517 = vpop.f32.mrf.mxu0
        %v518 = vadd.f32 0.0, %v517
        %v519 = vpop.f32.mrf.mxu0
        %v520 = vpop.f32.mrf.mxu0
        %v521 = vpop.f32.mrf.mxu0
        %522 = vdwg.mxu0
        %v523 = vadd.f32 %v454, %v518
        %v524 = vld [vmem:[%s4] sm:$0xff]
        %526 = vset.pattern.permute.xlu0 0
        %527 = vperm.xlu0 %526, %v524
        %v528 = vpop.permute.xlu0 %527
        %v530 = vadd.f32 %v523, %v528
        %v531 = vld [vmem:[%s6] sm:$0xff]
        %vm532 = vcmp.ge.f32.partialorder %v530, 0.0
        %534 = vset.pattern.permute.xlu0 0
        %535 = vperm.xlu0 %534, %v531
        %v536 = vpop.permute.xlu0 %535
        %v538 = vmul.f32 %v536, %v530
        %v539 = vsel %vm532, %v530, %v538
        %v540 = vld [vmem:[%s3] sm:$0xf]
        %v542 = vsel %vm365, %v540, 0
        %544 = vmatprep.subr.bf16.mxu0 0
        %545 = vmatpush1.bf16.msra.mxu0 0
        %546 = vmatprep.subr.bf16.mxu0 0
        %547 = vmatpush1.bf16.msra.mxu0 0
        %548 = vmatprep.subr.bf16.mxu0 0
        %549 = vmatpush1.bf16.msra.mxu0 0
        %550 = vmatprep.subr.bf16.mxu0 0
        %551 = vmatpush1.bf16.msra.mxu0 0
        %552 = vmatprep.subr.bf16.mxu0 0
        %553 = vmatpush1.bf16.msra.mxu0 0
        %554 = vmatprep.subr.bf16.mxu0 0
        %555 = vmatpush1.bf16.msra.mxu0 0
        %556 = vmatprep.subr.bf16.mxu0 0
        %557 = vmatpush1.bf16.msra.mxu0 0
        %558 = vmatprep.subr.bf16.mxu0 0
        %559 = vmatpush1.bf16.msra.mxu0 %v371
        %560 = vmatprep.subr.bf16.mxu0 0
        %561 = vmatpush2.bf16.msra.mxu0 0
        %562 = vmatprep.subr.bf16.mxu0 0
        %563 = vmatpush2.bf16.msra.mxu0 0
        %564 = vmatprep.subr.bf16.mxu0 0
        %565 = vmatpush2.bf16.msra.mxu0 0
        %566 = vmatprep.subr.bf16.mxu0 0
        %567 = vmatpush2.bf16.msra.mxu0 0
        %568 = vmatprep.subr.bf16.mxu0 0
        %569 = vmatpush2.bf16.msra.mxu0 0
        %570 = vmatprep.subr.bf16.mxu0 0
        %571 = vmatpush2.bf16.msra.mxu0 0
        %572 = vmatprep.subr.bf16.mxu0 0
        %573 = vmatpush2.bf16.msra.mxu0 0
        %574 = vmatprep.subr.bf16.mxu0 0
        %575 = vmatpush2.bf16.msra.mxu0 0
        %576 = vmatprep.mubr.bf16.mxu0 0
        %577 = vmatmul.mubr.bf16.gmra.mxu0 %v542
        %v578 = vpop.f32.mrf.mxu0
        %v579 = vadd.f32 0.0, %v578
        %v580 = vpop.f32.mrf.mxu0
        %v581 = vpop.f32.mrf.mxu0
        %v582 = vpop.f32.mrf.mxu0
        %583 = vdwg.mxu0
        %v584 = vadd.f32 %v539, %v579
        %v585 = vld [vmem:[%s5] sm:$0xff]
        %587 = vset.pattern.permute.xlu0 0
        %588 = vperm.xlu0 %587, %v585
        %v589 = vpop.permute.xlu0 %588
        %v591 = vadd.f32 %v584, %v589
        %v592 = vpack.c.bf16 %v591, %v591
        %593 = vst [vmem:[%s321] sm:$0xf] %v592
        %s594 = sand.u32 %s206, 1
        %s595 = scalar_lea.sflag [#allocation4], %s594
        %s596 = sand.u32 %s206, 1
        %s597 = smul.addr %s596, 4
        %s598 = scalar_lea.vmem [#allocation3], %s597
        // Predicated region
        $region49: #{tpu_custom_call.1} parent=47 // pred_check
          %p599 = pneg %p216
        $region50: #{tpu_custom_call.1} parent=47 // pred_check_branch
          %601 = sbr.rel (%p599) target = $region52
        $region51: #{tpu_custom_call.1} parent=47 // pred_region
          %s603 = ssub.s32 64, 64
          %604 = vsyncadd %s595, %s603
          %s605 = sadd.s32 %s26, %s25
          %s606 = smul.addr %s605, 64
          %s607 = scalar_lea.hbm %s7, %s606
          %s609 = sshll.u32 %s598, 4
          %s610 = int_to_ptr.vmem [resolvable:$true] %s609
          %612 = dma.vmem_to_hbm [thread:$0]  %s610, 64, %s607, %s595
        $region52: #{tpu_custom_call.1} parent=47 // pred_fallthru
          _
      $region48: #{tpu_custom_call.1} parent=5 // pred_fallthru
        _
      %p613 = scmp.le.s32.totalorder 2, %s16
      // Predicated region
      $region53: #{tpu_custom_call.1} parent=5 // pred_check
        %p614 = pneg %p613
      $region54: #{tpu_custom_call.1} parent=5 // pred_check_branch
        %616 = sbr.rel (%p614) target = $region56
      $region55: #{tpu_custom_call.1} parent=5 // pred_region
        %s617 = ssub.s32 %s16, 2
        // Predicated region
        $region57: #{tpu_custom_call.1} parent=55 // pred_check
          %p618 = pneg %p222
        $region58: #{tpu_custom_call.1} parent=55 // pred_check_branch
          %620 = sbr.rel (%p618) target = $region60
        $region59: #{tpu_custom_call.1} parent=55 // pred_region
          %s621 = sand.u32 %s207, 1
          %s622 = scalar_lea.sflag [#allocation4], %s621
          %s623 = sand.u32 %s207, 1
          %s624 = smul.addr %s623, 4
          %s625 = scalar_lea.vmem [#allocation3], %s624
          %626 = dma.done %s622, 64
        $region60: #{tpu_custom_call.1} parent=55 // pred_fallthru
          _
      $region56: #{tpu_custom_call.1} parent=5 // pred_fallthru
        _
    $region6: #{tpu_custom_call.1} parent=1 // loop_footer
      %s20 = sadd.s32 1, %s16
    $region7: #{tpu_custom_call.1} parent=1 // loop_footer_branch
      %15 = sbr.rel target = $region3
    $region8: #{tpu_custom_call.1} parent=1 // loop_exit
      _
    %627 = vsyncpa [#allocation4], 1
    %s628 = scalar_lea.sflag [#allocation4], 1
    %629 = vsyncpa %s628, 1

</llo_original>
